<compile_context>
chip_gen: v5e
topology: v5e:2x2
jax: 0.10.0
libtpu: 0.0.40
codegen_flags: <defaults>
</compile_context>

<pallas_src>
import functools

import jax
import jax.numpy as jnp
from jax import lax
from jax.experimental import pallas as pl
from jax.experimental.pallas import tpu as pltpu

LN_EPS = 1e-5      # PyTorch nn.LayerNorm default eps
LANE = 128         # TPU vreg lane width
SUBLANE_PACK = 16  # batch-tile granularity (bf16 sublane packing)


def _cdiv(a, b):
    return -(-a // b)


def _round_up(n, m):
    return _cdiv(n, m) * m


# ----------------------------------------------------------------------------- kernel
def projhead_kernel(x_ref, w1_ref, b1_ref, g_ref, beta_ref, w2_ref, b2_ref,
                    o_ref, *, d_in):
    """One batch tile: [TB, D_in_pad] -> [TB, D_out_pad].

    All parameter padding lanes are zero, so padded lanes of every intermediate
    are exactly zero and do not perturb the result.
    """
    x = x_ref[...].astype(jnp.bfloat16)            # no-op when x is already bf16

    # --- Linear 1 (MXU: bf16 operands, f32 accumulation) + bias ---
    h = jnp.dot(x, w1_ref[...], preferred_element_type=jnp.float32) + b1_ref[...]

    # --- LayerNorm over the *true* d_in lanes (padded lanes of h are zero) ---
    inv_n = 1.0 / d_in
    mu = jnp.sum(h, axis=-1, keepdims=True) * inv_n
    ex2 = jnp.sum(h * h, axis=-1, keepdims=True) * inv_n
    var = jnp.maximum(ex2 - mu * mu, 0.0)          # guard tiny negatives
    h_norm = (h - mu) * lax.rsqrt(var + LN_EPS) * g_ref[...] + beta_ref[...]

    # --- ReLU ---
    h_act = jnp.maximum(h_norm, 0.0)

    # --- Dropout(0.2): identity in eval mode ---
    # TODO(synk): training-mode dropout via pltpu.prng_seed / pltpu.prng_random_bits.

    # --- Linear 2 (MXU) + bias; lane-dense full-width store ---
    o_ref[...] = (jnp.dot(h_act.astype(jnp.bfloat16), w2_ref[...],
                          preferred_element_type=jnp.float32)
                  + b2_ref[...]).astype(o_ref.dtype)


# ----------------------------------------------------------------------------- params
def prepare_proj_head_params(w1, b1, gamma, beta, w2, b2):
    """One-time weight prep: zero-pad features to 128 lanes and cast matmul
    weights to bf16.  Call once at init; reuse the result for every forward."""
    d_in = w1.shape[0]
    d_out = w2.shape[1]
    d_in_p = _round_up(d_in, LANE)
    d_out_p = _round_up(d_out, LANE)
    f32, bf16 = jnp.float32, jnp.bfloat16

    w1_p = jnp.zeros((d_in_p, d_in_p), bf16).at[:d_in, :d_in].set(w1.astype(bf16))
    w2_p = jnp.zeros((d_in_p, d_out_p), bf16).at[:d_in, :d_out].set(w2.astype(bf16))
    b1_p = jnp.zeros((1, d_in_p), f32).at[0, :d_in].set(b1)
    g_p = jnp.zeros((1, d_in_p), f32).at[0, :d_in].set(gamma)
    be_p = jnp.zeros((1, d_in_p), f32).at[0, :d_in].set(beta)
    b2_p = jnp.zeros((1, d_out_p), f32).at[0, :d_out].set(b2)

    return (w1_p, b1_p, g_p, be_p, w2_p, b2_p), (d_in, d_out)


def _choose_batch_tile(B, block_b):
    """Batch tile that bounds padding waste and keeps >=2 grid steps when possible."""
    n_tiles = _cdiv(B, block_b)
    if n_tiles < 2 and B >= 2 * SUBLANE_PACK:
        n_tiles = 2                                  # feed both v7x TensorCores
    return _round_up(_cdiv(B, n_tiles), SUBLANE_PACK)


# ----------------------------------------------------------------------------- wrapper
def proj_head(x, padded_params, dims, *, block_b=1024):
    """x: [B, d_in] (f32 or bf16) -> [B, d_out] f32, using prepared params."""
    w1_p, b1_p, g_p, be_p, w2_p, b2_p = padded_params
    d_in, d_out = dims
    assert x.ndim == 2 and x.shape[1] == d_in
    B = x.shape[0]
    d_in_p = w1_p.shape[0]
    d_out_p = w2_p.shape[1]

    tb = _choose_batch_tile(B, block_b)
    b_p = _round_up(B, tb)
    grid = (b_p // tb,)

    # Pad x only when necessary; fuse the bf16 cast into that single pad-copy.
    needs_x_pad = (b_p != B) or (d_in_p != d_in)
    if needs_x_pad:
        x_in = jnp.zeros((b_p, d_in_p), jnp.bfloat16).at[:B, :d_in].set(
            x.astype(jnp.bfloat16))
    else:
        x_in = x                                     # aligned: no extra HBM pass

    def const_spec(shape):
        # Constant block index -> fetched once, stays VMEM-resident across grid steps.
        return pl.BlockSpec(shape, lambda i: (0, 0))

    # Explicit VMEM budget: double-buffered x / out tiles, resident weights
    # (counted twice to cover double-buffering), plus f32 intermediate headroom.
    x_itemsize = jnp.dtype(x_in.dtype).itemsize
    weight_bytes = ((d_in_p * d_in_p + d_in_p * d_out_p) * 2
                    + (3 * d_in_p + d_out_p) * 4)
    vmem_need = (2 * tb * d_in_p * x_itemsize
                 + 2 * tb * d_out_p * 4
                 + 2 * weight_bytes
                 + 6 * tb * d_in_p * 4)
    vmem_limit = max(16 << 20, min(_round_up(int(vmem_need * 1.2), 1 << 20), 64 << 20))
    # TODO(synk): for d_in_p >= 2048 on v7x (64 MiB VMEM), single-buffer the weight
    # specs (pipeline_mode=pl.Buffered(1)) or add a K-tiled grid axis with an f32
    # accumulator instead of keeping the full w1 block resident.

    # Advisory cost with true dims; weights counted once (resident, not per step).
    flops = 2 * B * d_in * (d_in + d_out)
    bytes_accessed = (B * d_in * x_itemsize + B * d_out * 4
                      + (d_in * d_in + d_in * d_out) * 2
                      + (3 * d_in + d_out) * 4)
    cost = pl.CostEstimate(flops=int(flops), transcendentals=int(B),
                           bytes_accessed=int(bytes_accessed))

    out_p = pl.pallas_call(
        functools.partial(projhead_kernel, d_in=d_in),
        out_shape=jax.ShapeDtypeStruct((b_p, d_out_p), jnp.float32),
        grid=grid,
        in_specs=[
            pl.BlockSpec((tb, d_in_p), lambda i: (i, 0)),   # x : tiled over batch
            const_spec((d_in_p, d_in_p)),                   # w1 (bf16, resident)
            const_spec((1, d_in_p)),                        # b1
            const_spec((1, d_in_p)),                        # gamma
            const_spec((1, d_in_p)),                        # beta
            const_spec((d_in_p, d_out_p)),                  # w2 (bf16, resident)
            const_spec((1, d_out_p)),                       # b2
        ],
        out_specs=pl.BlockSpec((tb, d_out_p), lambda i: (i, 0)),
        compiler_params=pltpu.CompilerParams(
            dimension_semantics=("parallel",),              # shard batch tiles across TCs
            vmem_limit_bytes=vmem_limit),
        cost_estimate=cost,
    )(x_in, w1_p, b1_p, g_p, be_p, w2_p, b2_p)

    if (b_p != B) or (d_out_p != d_out):
        out_p = out_p[:B, :d_out]
    return out_p


# ----------------------------------------------------------------------------- reference
def proj_head_ref(x, w1, b1, gamma, beta, w2, b2):
    h = x @ w1 + b1
    mu = jnp.mean(h, axis=-1, keepdims=True)
    var = jnp.mean((h - mu) ** 2, axis=-1, keepdims=True)
    h = (h - mu) / jnp.sqrt(var + LN_EPS) * gamma + beta
    h = jnp.maximum(h, 0.0)
    return h @ w2 + b2


if __name__ == "__main__":
    key = jax.random.PRNGKey(0)
    B, D_IN, D_OUT = 8, 32, 16
    k = jax.random.split(key, 5)

    x = jax.random.normal(k[0], (B, D_IN), dtype=jnp.float32)
    # Deterministic synthetic parameters (uniform, roughly nn.Linear-style scale).
    lim1 = 1.0 / jnp.sqrt(D_IN)
    w1 = jax.random.uniform(k[1], (D_IN, D_IN), jnp.float32, -lim1, lim1)
    b1 = jax.random.uniform(k[2], (D_IN,), jnp.float32, -lim1, lim1)
    gamma = jnp.ones((D_IN,), jnp.float32)   # LayerNorm weight init
    beta = jnp.zeros((D_IN,), jnp.float32)   # LayerNorm bias init
    w2 = jax.random.uniform(k[3], (D_IN, D_OUT), jnp.float32, -lim1, lim1)
    b2 = jax.random.uniform(k[4], (D_OUT,), jnp.float32, -lim1, lim1)

    # One-time weight prep (padding + bf16 cast hoisted out of the forward path).
    params, dims = prepare_proj_head_params(w1, b1, gamma, beta, w2, b2)

    out = proj_head(x, params, dims)
    jax.block_until_ready(out)

    ref = proj_head_ref(x, w1, b1, gamma, beta, w2, b2)
    assert out.shape == (B, D_OUT)
    # Tolerance loosened vs the pure-f32 reference because the MXU operands are bf16
    # (f32 accumulation); LN/ReLU/bias math is still f32.
    assert jnp.allclose(out, ref, atol=3e-2, rtol=3e-2), "mismatch vs JAX reference"
    print("KERNEL_OK")
</pallas_src>

<mosaic_0001>
module attributes {stable_mosaic.version = 11 : i64} {
  func.func @projhead_kernel(%arg0: i32, %arg1: memref<16x128xbf16, #tpu.memory_space<vmem>>, %arg2: memref<128x128xbf16, #tpu.memory_space<vmem>>, %arg3: memref<1x128xf32, #tpu.memory_space<vmem>>, %arg4: memref<1x128xf32, #tpu.memory_space<vmem>>, %arg5: memref<1x128xf32, #tpu.memory_space<vmem>>, %arg6: memref<128x128xbf16, #tpu.memory_space<vmem>>, %arg7: memref<1x128xf32, #tpu.memory_space<vmem>>, %arg8: memref<16x128xf32, #tpu.memory_space<vmem>>) attributes {dimension_semantics = [#tpu.dimension_semantics<parallel>], iteration_bounds = array<i64: 1>, scalar_prefetch = 0 : i64, scratch_operands = 0 : i64, tpu.core_type = #tpu.core_type<tc>, window_params = [{transform_indices = @transform_0, window_bounds = array<i64: 16, 128>}, {pipeline_mode = #tpu.pipeline_mode<synchronous>, transform_indices = @transform_1, window_bounds = array<i64: 128, 128>}, {pipeline_mode = #tpu.pipeline_mode<synchronous>, transform_indices = @transform_2, window_bounds = array<i64: 1, 128>}, {pipeline_mode = #tpu.pipeline_mode<synchronous>, transform_indices = @transform_3, window_bounds = array<i64: 1, 128>}, {pipeline_mode = #tpu.pipeline_mode<synchronous>, transform_indices = @transform_4, window_bounds = array<i64: 1, 128>}, {pipeline_mode = #tpu.pipeline_mode<synchronous>, transform_indices = @transform_5, window_bounds = array<i64: 128, 128>}, {pipeline_mode = #tpu.pipeline_mode<synchronous>, transform_indices = @transform_6, window_bounds = array<i64: 1, 128>}, {transform_indices = @transform_7, window_bounds = array<i64: 16, 128>}]} {
    %c0 = arith.constant 0 : index
    %c0_0 = arith.constant 0 : index
    %0 = vector.load %arg1[%c0, %c0_0] : memref<16x128xbf16, #tpu.memory_space<vmem>>, vector<16x128xbf16>
    %c0_1 = arith.constant 0 : index
    %c0_2 = arith.constant 0 : index
    %1 = vector.load %arg2[%c0_1, %c0_2] : memref<128x128xbf16, #tpu.memory_space<vmem>>, vector<128x128xbf16>
    %cst = arith.constant dense<0.000000e+00> : vector<16x128xf32>
    %2 = tpu.matmul %0, %1, %cst {dimension_numbers = #tpu.dot_dimension_numbers<[1], [0], [0], [1], [0, 0, 1, 1], [], []>} : vector<16x128xbf16>, vector<128x128xbf16>, vector<16x128xf32> -> vector<16x128xf32>
    %c0_3 = arith.constant 0 : index
    %c0_4 = arith.constant 0 : index
    %3 = vector.load %arg3[%c0_3, %c0_4] : memref<1x128xf32, #tpu.memory_space<vmem>>, vector<1x128xf32>
    %4 = vector.broadcast %3 : vector<1x128xf32> to vector<16x128xf32>
    %5 = arith.addf %2, %4 : vector<16x128xf32>
    %cst_5 = arith.constant dense<0.000000e+00> : vector<16xf32>
    %6 = vector.multi_reduction <add>, %5, %cst_5 [1] : vector<16x128xf32> to vector<16xf32>
    %7 = vector.shape_cast %6 : vector<16xf32> to vector<16x1xf32>
    %cst_6 = arith.constant 3.125000e-02 : f32
    %8 = vector.broadcast %cst_6 : f32 to vector<16x1xf32>
    %9 = arith.mulf %7, %8 : vector<16x1xf32>
    %10 = arith.mulf %5, %5 : vector<16x128xf32>
    %cst_7 = arith.constant dense<0.000000e+00> : vector<16xf32>
    %11 = vector.multi_reduction <add>, %10, %cst_7 [1] : vector<16x128xf32> to vector<16xf32>
    %12 = vector.shape_cast %11 : vector<16xf32> to vector<16x1xf32>
    %cst_8 = arith.constant 3.125000e-02 : f32
    %13 = vector.broadcast %cst_8 : f32 to vector<16x1xf32>
    %14 = arith.mulf %12, %13 : vector<16x1xf32>
    %15 = arith.mulf %9, %9 : vector<16x1xf32>
    %16 = arith.subf %14, %15 : vector<16x1xf32>
    %cst_9 = arith.constant 0.000000e+00 : f32
    %17 = vector.broadcast %cst_9 : f32 to vector<16x1xf32>
    %18 = arith.maximumf %16, %17 : vector<16x1xf32>
    %19 = vector.broadcast %9 : vector<16x1xf32> to vector<16x128xf32>
    %20 = arith.subf %5, %19 : vector<16x128xf32>
    %cst_10 = arith.constant 9.99999974E-6 : f32
    %21 = vector.broadcast %cst_10 : f32 to vector<16x1xf32>
    %22 = arith.addf %18, %21 : vector<16x1xf32>
    %23 = math.rsqrt %22 : vector<16x1xf32>
    %24 = vector.broadcast %23 : vector<16x1xf32> to vector<16x128xf32>
    %25 = arith.mulf %20, %24 : vector<16x128xf32>
    %c0_11 = arith.constant 0 : index
    %c0_12 = arith.constant 0 : index
    %26 = vector.load %arg4[%c0_11, %c0_12] : memref<1x128xf32, #tpu.memory_space<vmem>>, vector<1x128xf32>
    %27 = vector.broadcast %26 : vector<1x128xf32> to vector<16x128xf32>
    %28 = arith.mulf %25, %27 : vector<16x128xf32>
    %c0_13 = arith.constant 0 : index
    %c0_14 = arith.constant 0 : index
    %29 = vector.load %arg5[%c0_13, %c0_14] : memref<1x128xf32, #tpu.memory_space<vmem>>, vector<1x128xf32>
    %30 = vector.broadcast %29 : vector<1x128xf32> to vector<16x128xf32>
    %31 = arith.addf %28, %30 : vector<16x128xf32>
    %cst_15 = arith.constant 0.000000e+00 : f32
    %32 = vector.broadcast %cst_15 : f32 to vector<16x128xf32>
    %33 = arith.maximumf %31, %32 : vector<16x128xf32>
    %34 = arith.truncf %33 : vector<16x128xf32> to vector<16x128xbf16>
    %c0_16 = arith.constant 0 : index
    %c0_17 = arith.constant 0 : index
    %35 = vector.load %arg6[%c0_16, %c0_17] : memref<128x128xbf16, #tpu.memory_space<vmem>>, vector<128x128xbf16>
    %cst_18 = arith.constant dense<0.000000e+00> : vector<16x128xf32>
    %36 = tpu.matmul %34, %35, %cst_18 {dimension_numbers = #tpu.dot_dimension_numbers<[1], [0], [0], [1], [0, 0, 1, 1], [], []>} : vector<16x128xbf16>, vector<128x128xbf16>, vector<16x128xf32> -> vector<16x128xf32>
    %c0_19 = arith.constant 0 : index
    %c0_20 = arith.constant 0 : index
    %37 = vector.load %arg7[%c0_19, %c0_20] : memref<1x128xf32, #tpu.memory_space<vmem>>, vector<1x128xf32>
    %38 = vector.broadcast %37 : vector<1x128xf32> to vector<16x128xf32>
    %39 = arith.addf %36, %38 : vector<16x128xf32>
    %c0_21 = arith.constant 0 : index
    %c0_22 = arith.constant 0 : index
    %40 = vector.load %arg8[%c0_21, %c0_22] : memref<16x128xf32, #tpu.memory_space<vmem>>, vector<16x128xf32>
    tpu.vector_store %arg8[%c0_21, %c0_22], %39 {strides = array<i32>} : memref<16x128xf32, #tpu.memory_space<vmem>>, vector<16x128xf32>,
    return
  }
  func.func @transform_0(%arg0: i32) -> (i32, i32) {
    %c0_i32 = arith.constant 0 : i32
    %c0_i32_0 = arith.constant 0 : i32
    return %arg0, %c0_i32 : i32, i32
  }
  func.func @transform_1(%arg0: i32) -> (i32, i32) {
    %c0_i32 = arith.constant 0 : i32
    %c0_i32_0 = arith.constant 0 : i32
    %c0_i32_1 = arith.constant 0 : i32
    return %c0_i32, %c0_i32_0 : i32, i32
  }
  func.func @transform_2(%arg0: i32) -> (i32, i32) {
    %c0_i32 = arith.constant 0 : i32
    %c0_i32_0 = arith.constant 0 : i32
    %c0_i32_1 = arith.constant 0 : i32
    return %c0_i32, %c0_i32_0 : i32, i32
  }
  func.func @transform_3(%arg0: i32) -> (i32, i32) {
    %c0_i32 = arith.constant 0 : i32
    %c0_i32_0 = arith.constant 0 : i32
    %c0_i32_1 = arith.constant 0 : i32
    return %c0_i32, %c0_i32_0 : i32, i32
  }
  func.func @transform_4(%arg0: i32) -> (i32, i32) {
    %c0_i32 = arith.constant 0 : i32
    %c0_i32_0 = arith.constant 0 : i32
    %c0_i32_1 = arith.constant 0 : i32
    return %c0_i32, %c0_i32_0 : i32, i32
  }
  func.func @transform_5(%arg0: i32) -> (i32, i32) {
    %c0_i32 = arith.constant 0 : i32
    %c0_i32_0 = arith.constant 0 : i32
    %c0_i32_1 = arith.constant 0 : i32
    return %c0_i32, %c0_i32_0 : i32, i32
  }
  func.func @transform_6(%arg0: i32) -> (i32, i32) {
    %c0_i32 = arith.constant 0 : i32
    %c0_i32_0 = arith.constant 0 : i32
    %c0_i32_1 = arith.constant 0 : i32
    return %c0_i32, %c0_i32_0 : i32, i32
  }
  func.func @transform_7(%arg0: i32) -> (i32, i32) {
    %c0_i32 = arith.constant 0 : i32
    %c0_i32_0 = arith.constant 0 : i32
    return %arg0, %c0_i32 : i32, i32
  }
}

</mosaic_0001>

<llo_original>
// kernel: tpu_custom_call.1
$region0: #{tpu_custom_call.1}
  #allocation0 [shape = 'u32[]', space=smem, size = 0x4, offset = 0x4, fixed_abs, tag = 'smem constant byte address 0x4 - core index']
  #allocation1 [shape = 'u32[72,128]{1,0:T(1,128)}', space=vmem, size = 0x9000, scoped, tag = 'internal scratch']
  %s0 = inlined_call_operand.hbm [shape: bf16[16,128], index: 0, kind: input, shape index: {}]
  %s1 = inlined_call_operand.hbm [shape: bf16[128,128], index: 1, kind: input, shape index: {}]
  %s2 = inlined_call_operand.vmem [shape: f32[1,128], index: 2, kind: input, shape index: {}]
  %s3 = inlined_call_operand.vmem [shape: f32[1,128], index: 3, kind: input, shape index: {}]
  %s4 = inlined_call_operand.vmem [shape: f32[1,128], index: 4, kind: input, shape index: {}]
  %s5 = inlined_call_operand.hbm [shape: bf16[128,128], index: 5, kind: input, shape index: {}]
  %s6 = inlined_call_operand.vmem [shape: f32[1,128], index: 6, kind: input, shape index: {}]
  %s7 = inlined_call_operand.hbm [shape: f32[16,128], index: 7, kind: output, shape index: {}]
  %s8 = sld [smem:[#allocation0]]
  $region50: #{tpu_custom_call.1} parent=0
    _
  %s10 = ssub.s32 1, %s8
  %s11 = scalar_select 0, %s10, %s8
  $region1: #{tpu_custom_call.1} parent=0
    #allocation2 [shape = 'u8[4096]{0}', space=vmem, size = 0x1000, scoped, tag = 'input window, operand 0, single buffered']
    #allocation3 [shape = 's32[1]{0}', space=sflag, size = 0x4, scoped, tag = 'scoped memory for tpu_custom_call.1']
    #allocation4 [shape = 's32[1]{0}', space=sflag, size = 0x4, scoped, tag = 'scoped memory for tpu_custom_call.1']
    #allocation5 [shape = 'u8[32768]{0}', space=vmem, size = 0x8000, scoped, tag = 'input window, operand 1, single buffered']
    #allocation6 [shape = 's32[1]{0}', space=sflag, size = 0x4, scoped, tag = 'scoped memory for tpu_custom_call.1']
    #allocation7 [shape = 'u8[32768]{0}', space=vmem, size = 0x8000, scoped, tag = 'input window, operand 5, single buffered']
    #allocation8 [shape = 'u8[8192]{0}', space=vmem, size = 0x2000, scoped, tag = 'output window, operand 0, single buffered']
    %12 = vsyncpa [#allocation3], 0
    %13 = vsyncpa [#allocation6], 0
    %14 = vsyncpa [#allocation4], 0
    // Predicated region
    $region2: #{tpu_custom_call.1} parent=1 // pred_check
      _
    $region3: #{tpu_custom_call.1} parent=1 // pred_check_branch
      %16 = sbr.rel (0) target = $region5
    $region4: #{tpu_custom_call.1} parent=1 // pred_region
      %18 = vsyncadd [#allocation3], 0
      %s19 = sshll.u32 %s0, 4
      %s20 = int_to_ptr.hbm [resolvable:$true] %s19
      %s21 = sshll.u32 [#allocation2], 4
      %s22 = int_to_ptr.vmem [resolvable:$true] %s21
      %27 = dma.hbm_to_vmem [thread:$0]  %s20, 128, %s22, [#allocation3], 64, 64, 4
    $region5: #{tpu_custom_call.1} parent=1 // pred_fallthru
      _
    // Predicated region
    $region6: #{tpu_custom_call.1} parent=1 // pred_check
      _
    $region7: #{tpu_custom_call.1} parent=1 // pred_check_branch
      %29 = sbr.rel (0) target = $region9
    $region8: #{tpu_custom_call.1} parent=1 // pred_region
      %31 = vsyncadd [#allocation6], 0
      %s32 = sshll.u32 %s1, 4
      %s33 = int_to_ptr.hbm [resolvable:$true] %s32
      %s34 = sshll.u32 [#allocation5], 4
      %s35 = int_to_ptr.vmem [resolvable:$true] %s34
      %40 = dma.hbm_to_vmem [thread:$0]  %s33, 1024, %s35, [#allocation6], 64, 64, 4
    $region9: #{tpu_custom_call.1} parent=1 // pred_fallthru
      _
    // Predicated region
    $region10: #{tpu_custom_call.1} parent=1 // pred_check
      _
    $region11: #{tpu_custom_call.1} parent=1 // pred_check_branch
      %42 = sbr.rel (0) target = $region13
    $region12: #{tpu_custom_call.1} parent=1 // pred_region
      _
    $region13: #{tpu_custom_call.1} parent=1 // pred_fallthru
      _
    // Predicated region
    $region14: #{tpu_custom_call.1} parent=1 // pred_check
      _
    $region15: #{tpu_custom_call.1} parent=1 // pred_check_branch
      %44 = sbr.rel (0) target = $region17
    $region16: #{tpu_custom_call.1} parent=1 // pred_region
      _
    $region17: #{tpu_custom_call.1} parent=1 // pred_fallthru
      _
    // Predicated region
    $region18: #{tpu_custom_call.1} parent=1 // pred_check
      _
    $region19: #{tpu_custom_call.1} parent=1 // pred_check_branch
      %46 = sbr.rel (0) target = $region21
    $region20: #{tpu_custom_call.1} parent=1 // pred_region
      _
    $region21: #{tpu_custom_call.1} parent=1 // pred_fallthru
      _
    // Predicated region
    $region22: #{tpu_custom_call.1} parent=1 // pred_check
      _
    $region23: #{tpu_custom_call.1} parent=1 // pred_check_branch
      %48 = sbr.rel (0) target = $region25
    $region24: #{tpu_custom_call.1} parent=1 // pred_region
      %50 = vsyncadd [#allocation6], 0
      %s51 = sshll.u32 %s5, 4
      %s52 = int_to_ptr.hbm [resolvable:$true] %s51
      %s53 = sshll.u32 [#allocation7], 4
      %s54 = int_to_ptr.vmem [resolvable:$true] %s53
      %59 = dma.hbm_to_vmem [thread:$0]  %s52, 1024, %s54, [#allocation6], 64, 64, 4
    $region25: #{tpu_custom_call.1} parent=1 // pred_fallthru
      _
    // Predicated region
    $region26: #{tpu_custom_call.1} parent=1 // pred_check
      _
    $region27: #{tpu_custom_call.1} parent=1 // pred_check_branch
      %61 = sbr.rel (0) target = $region29
    $region28: #{tpu_custom_call.1} parent=1 // pred_region
      _
    $region29: #{tpu_custom_call.1} parent=1 // pred_fallthru
      _
    // Predicated region
    $region30: #{tpu_custom_call.1} parent=1 // pred_check
      _
    $region31: #{tpu_custom_call.1} parent=1 // pred_check_branch
      %63 = sbr.rel (0) target = $region33
    $region32: #{tpu_custom_call.1} parent=1 // pred_region
      %65 = dma.done [#allocation3], 128
    $region33: #{tpu_custom_call.1} parent=1 // pred_fallthru
      _
    // Predicated region
    $region34: #{tpu_custom_call.1} parent=1 // pred_check
      _
    $region35: #{tpu_custom_call.1} parent=1 // pred_check_branch
      %67 = sbr.rel (0) target = $region37
    $region36: #{tpu_custom_call.1} parent=1 // pred_region
      %69 = dma.done [#allocation6], 1024
    $region37: #{tpu_custom_call.1} parent=1 // pred_fallthru
      _
    // Predicated region
    $region38: #{tpu_custom_call.1} parent=1 // pred_check
      _
    $region39: #{tpu_custom_call.1} parent=1 // pred_check_branch
      %71 = sbr.rel (0) target = $region41
    $region40: #{tpu_custom_call.1} parent=1 // pred_region
      %73 = dma.done [#allocation6], 1024
    $region41: #{tpu_custom_call.1} parent=1 // pred_fallthru
      _
    %v74 = vld [vmem:[#allocation2] sm:$0xf]
    %v75 = vld [vmem:[#allocation2 + $0x4] sm:$0xf]
    %v76 = vld [vmem:[#allocation5] sm:$0xf]
    %v77 = vld [vmem:[#allocation5 + $0x4] sm:$0xf]
    %v78 = vld [vmem:[#allocation5 + $0x8] sm:$0xf]
    %v79 = vld [vmem:[#allocation5 + $0xc] sm:$0xf]
    %v80 = vld [vmem:[#allocation5 + $0x10] sm:$0xf]
    %v81 = vld [vmem:[#allocation5 + $0x14] sm:$0xf]
    %v82 = vld [vmem:[#allocation5 + $0x18] sm:$0xf]
    %v83 = vld [vmem:[#allocation5 + $0x1c] sm:$0xf]
    %v84 = vld [vmem:[#allocation5 + $0x20] sm:$0xf]
    %v85 = vld [vmem:[#allocation5 + $0x24] sm:$0xf]
    %v86 = vld [vmem:[#allocation5 + $0x28] sm:$0xf]
    %v87 = vld [vmem:[#allocation5 + $0x2c] sm:$0xf]
    %v88 = vld [vmem:[#allocation5 + $0x30] sm:$0xf]
    %v89 = vld [vmem:[#allocation5 + $0x34] sm:$0xf]
    %v90 = vld [vmem:[#allocation5 + $0x38] sm:$0xf]
    %v91 = vld [vmem:[#allocation5 + $0x3c] sm:$0xf]
    %v92 = vld [vmem:[%s2] sm:$0x1]
    %v94 = vperm.slane %v92, 0
    %v98 = vunpack.c.l.b16 %v74
    %v99 = vunpack.c.l.b16 %v75
    %v100 = vpack.c.b16 %v99, %v98
    %v118 = vunpack.c.l.b16 %v76
    %v119 = vunpack.c.l.b16 %v77
    %v120 = vunpack.c.l.b16 %v78
    %v121 = vunpack.c.l.b16 %v79
    %v122 = vunpack.c.l.b16 %v80
    %v123 = vunpack.c.l.b16 %v81
    %v124 = vunpack.c.l.b16 %v82
    %v125 = vunpack.c.l.b16 %v83
    %v126 = vunpack.c.l.b16 %v84
    %v127 = vunpack.c.l.b16 %v85
    %v128 = vunpack.c.l.b16 %v86
    %v129 = vunpack.c.l.b16 %v87
    %v130 = vunpack.c.l.b16 %v88
    %v131 = vunpack.c.l.b16 %v89
    %v132 = vunpack.c.l.b16 %v90
    %v133 = vunpack.c.l.b16 %v91
    %v134 = vpack.c.b16 %v119, %v118
    %v135 = vpack.c.b16 %v121, %v120
    %v136 = vpack.c.b16 %v123, %v122
    %v137 = vpack.c.b16 %v125, %v124
    %v138 = vpack.c.b16 %v127, %v126
    %v139 = vpack.c.b16 %v129, %v128
    %v140 = vpack.c.b16 %v131, %v130
    %v141 = vpack.c.b16 %v133, %v132
    %150 = vmatpush.bf16.msra.mxu0 %v141
    %151 = vmatpush.bf16.msra.mxu0 %v140
    %152 = vmatpush.bf16.msra.mxu0 %v139
    %153 = vmatpush.bf16.msra.mxu0 %v138
    %154 = vmatpush.bf16.msra.mxu0 %v137
    %155 = vmatpush.bf16.msra.mxu0 %v136
    %156 = vmatpush.bf16.msra.mxu0 %v135
    %157 = vmatpush.bf16.msra.mxu0 %v134
    %158 = vmatmul.bf16.gmra.mxu0 %v100
    %v159 = vpop.f32.mrf.mxu0
    %v160 = vadd.f32 %v94, %v159
    %v161 = vpop.f32.mrf.mxu0
    %v162 = vadd.f32 %v94, %v161
    %163 = vdwg.mxu0
    %164 = vadd.xlane.f32.xlu0 %v160
    %v165 = vpop.xlane.xlu0 %164
    %166 = vadd.xlane.f32.xlu0 %v162
    %v167 = vpop.xlane.xlu0 %166
    %v168 = vmul.f32 %v165, 0.03125
    %v169 = vmul.f32 %v167, 0.03125
    %v170 = vmul.f32 %v160, %v160
    %v171 = vmul.f32 %v162, %v162
    %172 = vadd.xlane.f32.xlu0 %v170
    %v173 = vpop.xlane.xlu0 %172
    %174 = vadd.xlane.f32.xlu0 %v171
    %v175 = vpop.xlane.xlu0 %174
    %v176 = vmul.f32 %v173, 0.03125
    %v177 = vmul.f32 %v175, 0.03125
    %v178 = vmul.f32 %v168, %v168
    %v179 = vmul.f32 %v169, %v169
    %v180 = vsub.f32 %v176, %v178
    %v181 = vsub.f32 %v177, %v179
    %v182 = vmax.f32 %v180, 0.0
    %v183 = vmax.f32 %v181, 0.0
    %v184 = vsub.f32 %v160, %v168
    %v185 = vsub.f32 %v162, %v169
    %v186 = vadd.f32 %v182, 1e-05
    %v187 = vadd.f32 %v183, 1e-05
    %v188 = vrsqrt.pop %v186
    %v189 = vmul.f32 %v188, %v186
    %v190 = vmul.f32 %v189, %v188
    %v191 = vmul.f32 0.5, %v190
    %v192 = vsub.f32 1.5, %v191
    %v193 = vmul.f32 %v188, %v192
    %vm194 = vweird.f32 %v186
    %vm195 = vweird.f32 %v188
    %vm196 = vmor %vm194, %vm195
    %v197 = vsel %vm196, %v188, %v193
    %v198 = vrsqrt.pop %v187
    %v199 = vmul.f32 %v198, %v187
    %v200 = vmul.f32 %v199, %v198
    %v201 = vmul.f32 0.5, %v200
    %v202 = vsub.f32 1.5, %v201
    %v203 = vmul.f32 %v198, %v202
    %vm204 = vweird.f32 %v187
    %vm205 = vweird.f32 %v198
    %vm206 = vmor %vm204, %vm205
    %v207 = vsel %vm206, %v198, %v203
    %v208 = vmul.f32 %v184, %v197
    %v209 = vmul.f32 %v185, %v207
    %v210 = vld [vmem:[%s3] sm:$0x1]
    %v212 = vperm.slane %v210, 0
    %v214 = vmul.f32 %v208, %v212
    %v215 = vmul.f32 %v209, %v212
    %v216 = vld [vmem:[%s4] sm:$0x1]
    %v218 = vperm.slane %v216, 0
    %v220 = vadd.f32 %v214, %v218
    %v221 = vadd.f32 %v215, %v218
    %v222 = vmax.f32 %v220, 0.0
    %v223 = vmax.f32 %v221, 0.0
    %v224 = vpack.c.bf16 %v223, %v222
    %v225 = vld [vmem:[#allocation7] sm:$0xf]
    %v226 = vld [vmem:[#allocation7 + $0x4] sm:$0xf]
    %v227 = vld [vmem:[#allocation7 + $0x8] sm:$0xf]
    %v228 = vld [vmem:[#allocation7 + $0xc] sm:$0xf]
    %v229 = vld [vmem:[#allocation7 + $0x10] sm:$0xf]
    %v230 = vld [vmem:[#allocation7 + $0x14] sm:$0xf]
    %v231 = vld [vmem:[#allocation7 + $0x18] sm:$0xf]
    %v232 = vld [vmem:[#allocation7 + $0x1c] sm:$0xf]
    %v233 = vld [vmem:[#allocation7 + $0x20] sm:$0xf]
    %v234 = vld [vmem:[#allocation7 + $0x24] sm:$0xf]
    %v235 = vld [vmem:[#allocation7 + $0x28] sm:$0xf]
    %v236 = vld [vmem:[#allocation7 + $0x2c] sm:$0xf]
    %v237 = vld [vmem:[#allocation7 + $0x30] sm:$0xf]
    %v238 = vld [vmem:[#allocation7 + $0x34] sm:$0xf]
    %v239 = vld [vmem:[#allocation7 + $0x38] sm:$0xf]
    %v240 = vld [vmem:[#allocation7 + $0x3c] sm:$0xf]
    %v241 = vld [vmem:[%s6] sm:$0x1]
    %v243 = vperm.slane %v241, 0
    %v261 = vunpack.c.l.b16 %v225
    %v262 = vunpack.c.l.b16 %v226
    %v263 = vunpack.c.l.b16 %v227
    %v264 = vunpack.c.l.b16 %v228
    %v265 = vunpack.c.l.b16 %v229
    %v266 = vunpack.c.l.b16 %v230
    %v267 = vunpack.c.l.b16 %v231
    %v268 = vunpack.c.l.b16 %v232
    %v269 = vunpack.c.l.b16 %v233
    %v270 = vunpack.c.l.b16 %v234
    %v271 = vunpack.c.l.b16 %v235
    %v272 = vunpack.c.l.b16 %v236
    %v273 = vunpack.c.l.b16 %v237
    %v274 = vunpack.c.l.b16 %v238
    %v275 = vunpack.c.l.b16 %v239
    %v276 = vunpack.c.l.b16 %v240
    %v277 = vpack.c.b16 %v262, %v261
    %v278 = vpack.c.b16 %v264, %v263
    %v279 = vpack.c.b16 %v266, %v265
    %v280 = vpack.c.b16 %v268, %v267
    %v281 = vpack.c.b16 %v270, %v269
    %v282 = vpack.c.b16 %v272, %v271
    %v283 = vpack.c.b16 %v274, %v273
    %v284 = vpack.c.b16 %v276, %v275
    %293 = vmatpush.bf16.msra.mxu0 %v284
    %294 = vmatpush.bf16.msra.mxu0 %v283
    %295 = vmatpush.bf16.msra.mxu0 %v282
    %296 = vmatpush.bf16.msra.mxu0 %v281
    %297 = vmatpush.bf16.msra.mxu0 %v280
    %298 = vmatpush.bf16.msra.mxu0 %v279
    %299 = vmatpush.bf16.msra.mxu0 %v278
    %300 = vmatpush.bf16.msra.mxu0 %v277
    %301 = vmatmul.bf16.gmra.mxu0 %v224
    %v302 = vpop.f32.mrf.mxu0
    %v303 = vadd.f32 %v243, %v302
    %v304 = vpop.f32.mrf.mxu0
    %v305 = vadd.f32 %v243, %v304
    %306 = vdwg.mxu0
    %307 = vst [vmem:[#allocation8] sm:$0xff] %v303
    %308 = vst [vmem:[#allocation8 + $0x8] sm:$0xff] %v305
    // Predicated region
    $region42: #{tpu_custom_call.1} parent=1 // pred_check
      _
    $region43: #{tpu_custom_call.1} parent=1 // pred_check_branch
      %310 = sbr.rel (0) target = $region45
    $region44: #{tpu_custom_call.1} parent=1 // pred_region
      %312 = vsyncadd [#allocation4], 0
      %s313 = sshll.u32 [#allocation8], 4
      %s314 = int_to_ptr.vmem [resolvable:$true] %s313
      %s315 = sshll.u32 %s7, 4
      %s316 = int_to_ptr.hbm [resolvable:$true] %s315
      %321 = dma.vmem_to_hbm [thread:$0]  %s314, 256, %s316, [#allocation4], 128, 128, 8
    $region45: #{tpu_custom_call.1} parent=1 // pred_fallthru
      _
    // Predicated region
    $region46: #{tpu_custom_call.1} parent=1 // pred_check
      _
    $region47: #{tpu_custom_call.1} parent=1 // pred_check_branch
      %323 = sbr.rel (0) target = $region49
    $region48: #{tpu_custom_call.1} parent=1 // pred_region
      %325 = dma.done [#allocation4], 256
    $region49: #{tpu_custom_call.1} parent=1 // pred_fallthru
      _
    %326 = vsyncpa [#allocation3], 1
    %327 = vsyncpa [#allocation6], 1
    %328 = vsyncpa [#allocation4], 1

</llo_original>
